<compile_context>
chip_gen: v7x
topology: tpu7x:2x2x1
jax: 0.10.0
libtpu: 0.0.40
codegen_flags: <defaults>
</compile_context>

<pallas_src>
import jax
import jax.numpy as jnp
from jax.experimental import pallas as pl
from jax.experimental.pallas import tpu as pltpu

HIDDEN1 = 65       # out_features of first Linear (as declared)
HIDDEN2 = 64       # in_features of second Linear (as declared)
HIDDEN_PAD = 128   # lane-padded hidden width
MAX_TB = 4096      # batch tile cap (multiple of 8)
SMALL_BATCH = 256  # below this, XLA-fused jnp path wins over pallas_call


def _round_up(n, m):
    return ((n + m - 1) // m) * m


def mlp_kernel(x_ref, w1_ref, b1_ref, w2_ref, b2_ref, o_ref):
    # Fused Linear -> Tanh -> Linear; f32 MXU accumulation, f32 tanh (EUP).
    h = jnp.dot(x_ref[...], w1_ref[...], preferred_element_type=jnp.float32)
    h = jnp.tanh(h + b1_ref[...])
    out = jnp.dot(h, w2_ref[...], preferred_element_type=jnp.float32) + b2_ref[...]
    o_ref[...] = out.astype(o_ref.dtype)


def prepare_params(w1, b1, w2, b2):
    """Zero-pad weights ONCE (hoisted out of the per-call forward path).

    w1: (F, 65)  -> (F, 128)        b1: (1, 65) -> (1, 128)
    w2: (64, A)  -> (128, A_pad)    b2: (1, A)  -> (1, A_pad),  A_pad = round_up(A, 8)
    Zero rows 64..127 of the padded W2 reproduce h[:, :64] @ w2 exactly.
    """
    F = w1.shape[0]
    A = w2.shape[1]
    a_pad = _round_up(A, 8)
    w1p = jnp.zeros((F, HIDDEN_PAD), jnp.float32).at[:, :HIDDEN1].set(w1)
    b1p = jnp.zeros((1, HIDDEN_PAD), jnp.float32).at[:, :HIDDEN1].set(b1.reshape(1, -1))
    w2p = jnp.zeros((HIDDEN_PAD, a_pad), jnp.float32).at[:HIDDEN2, :A].set(w2)
    b2p = jnp.zeros((1, a_pad), jnp.float32).at[:, :A].set(b2.reshape(1, -1))
    return dict(w1p=w1p, b1p=b1p, w2p=w2p, b2p=b2p, n_actions=A)


def _choose_batch_tile(B):
    """Pick a batch tile: multiple of 8, low pad waste, >=2 grid steps when big
    enough (so v7x megacore can split the 'parallel' axis), capped at MAX_TB."""
    Bp8 = _round_up(max(B, 1), 8)
    if Bp8 <= 16:
        return Bp8                           # tiny batch: single grid step
    n_steps = max(2, -(-Bp8 // MAX_TB))      # at least 2 steps, tiles <= MAX_TB
    tb = _round_up(-(-Bp8 // n_steps), 8)
    return min(tb, MAX_TB)


def network_forward(x, params, *, force_pallas=False):
    """x: (B, F) f32; params from prepare_params(). Returns (B, n_actions)."""
    B, F = x.shape
    A = params["n_actions"]
    w1p, b1p, w2p, b2p = params["w1p"], params["b1p"], params["w2p"], params["b2p"]
    a_pad = w2p.shape[1]

    if not force_pallas and B < SMALL_BATCH:
        # Small-batch dispatch: XLA fuses the whole MLP into one pass; the
        # pallas_call fixed cost (grid setup, DMA descriptors, pad/slice ops)
        # dominates at this size.
        h = jnp.tanh(x @ w1p[:, :HIDDEN1] + b1p[:, :HIDDEN1])
        return h[:, :HIDDEN2] @ w2p[:HIDDEN2, :A] + b2p[:, :A]

    # --- batch tiling ---
    tb = _choose_batch_tile(B)
    Bp = _round_up(B, tb)
    xp = x if Bp == B else jnp.pad(x, ((0, Bp - B), (0, 0)))
    grid = (Bp // tb,)

    out = pl.pallas_call(
        mlp_kernel,
        out_shape=jax.ShapeDtypeStruct((Bp, a_pad), jnp.float32),
        grid=grid,
        in_specs=[
            pl.BlockSpec((tb, F), lambda i: (i, 0)),                # x: batch-tiled
            pl.BlockSpec((F, HIDDEN_PAD), lambda i: (0, 0)),        # W1: resident
            pl.BlockSpec((1, HIDDEN_PAD), lambda i: (0, 0)),        # b1: resident
            pl.BlockSpec((HIDDEN_PAD, a_pad), lambda i: (0, 0)),    # W2: resident
            pl.BlockSpec((1, a_pad), lambda i: (0, 0)),             # b2: resident
        ],
        out_specs=pl.BlockSpec((tb, a_pad), lambda i: (i, 0)),      # narrow output
        compiler_params=pltpu.CompilerParams(
            dimension_semantics=("parallel",)),  # v7x: shard batch across 2 TCs
    )(xp, w1p, b1p, w2p, b2p)

    # Trivial slice: only drops batch padding + the (A_pad - A) <= 7 spare lanes.
    return out[:B, :A]


def init_params(key, in_feature, n_actions):
    # Deterministic init mimicking PyTorch Linear default U(-1/sqrt(fan_in), ...).
    k1, k2, k3, k4 = jax.random.split(key, 4)
    lim1 = 1.0 / jnp.sqrt(in_feature)
    lim2 = 1.0 / jnp.sqrt(HIDDEN2)
    w1 = jax.random.uniform(k1, (in_feature, HIDDEN1), jnp.float32, -lim1, lim1)
    b1 = jax.random.uniform(k2, (1, HIDDEN1), jnp.float32, -lim1, lim1)
    w2 = jax.random.uniform(k3, (HIDDEN2, n_actions), jnp.float32, -lim2, lim2)
    b2 = jax.random.uniform(k4, (1, n_actions), jnp.float32, -lim2, lim2)
    return w1, b1, w2, b2


def reference_forward(x, w1, b1, w2, b2):
    h = jnp.tanh(x @ w1 + b1)
    return h[:, :HIDDEN2] @ w2 + b2


if __name__ == "__main__":
    key = jax.random.PRNGKey(0)
    k_params, k_x1, k_x2 = jax.random.split(key, 3)

    # Small env-like shapes: observation_space.shape = (8,), action_space.n = 4
    in_feature = 8
    n_actions = 4

    w1, b1, w2, b2 = init_params(k_params, in_feature, n_actions)
    params = prepare_params(w1, b1, w2, b2)   # padding hoisted, done once

    # 1) Tiny batch (batch=2), forced through the Pallas kernel path.
    x_small = jax.random.normal(k_x1, (2, in_feature), jnp.float32)
    out_small = jax.block_until_ready(network_forward(x_small, params, force_pallas=True))
    ref_small = reference_forward(x_small, w1, b1, w2, b2)
    assert out_small.shape == (2, n_actions)
    assert jnp.allclose(out_small, ref_small, atol=1e-5, rtol=1e-5)

    # 2) Non-tile-aligned batch exercising the multi-step grid (2 grid steps,
    #    resident weights across steps) + batch padding path.
    x_big = jax.random.normal(k_x2, (300, in_feature), jnp.float32)
    out_big = jax.block_until_ready(network_forward(x_big, params, force_pallas=True))
    ref_big = reference_forward(x_big, w1, b1, w2, b2)
    assert out_big.shape == (300, n_actions)
    assert jnp.allclose(out_big, ref_big, atol=1e-5, rtol=1e-5)

    # 3) Auto-dispatch small-batch fallback (plain XLA MLP) for completeness.
    out_auto = jax.block_until_ready(network_forward(x_small, params))
    assert jnp.allclose(out_auto, ref_small, atol=1e-5, rtol=1e-5)

    print("KERNEL_OK")
</pallas_src>

<mosaic_0001>
module attributes {stable_mosaic.version = 11 : i64} {
  func.func @mlp_kernel(%arg0: i32, %arg1: memref<8x8xf32, #tpu.memory_space<vmem>>, %arg2: memref<8x128xf32, #tpu.memory_space<vmem>>, %arg3: memref<1x128xf32, #tpu.memory_space<vmem>>, %arg4: memref<128x8xf32, #tpu.memory_space<vmem>>, %arg5: memref<1x8xf32, #tpu.memory_space<vmem>>, %arg6: memref<8x8xf32, #tpu.memory_space<vmem>>) attributes {dimension_semantics = [#tpu.dimension_semantics<parallel>], iteration_bounds = array<i64: 1>, scalar_prefetch = 0 : i64, scratch_operands = 0 : i64, tpu.core_type = #tpu.core_type<tc>, window_params = [{transform_indices = @transform_0, window_bounds = array<i64: 8, 8>}, {pipeline_mode = #tpu.pipeline_mode<synchronous>, transform_indices = @transform_1, window_bounds = array<i64: 8, 128>}, {pipeline_mode = #tpu.pipeline_mode<synchronous>, transform_indices = @transform_2, window_bounds = array<i64: 1, 128>}, {pipeline_mode = #tpu.pipeline_mode<synchronous>, transform_indices = @transform_3, window_bounds = array<i64: 128, 8>}, {pipeline_mode = #tpu.pipeline_mode<synchronous>, transform_indices = @transform_4, window_bounds = array<i64: 1, 8>}, {transform_indices = @transform_5, window_bounds = array<i64: 8, 8>}]} {
    %c0 = arith.constant 0 : index
    %c0_0 = arith.constant 0 : index
    %0 = vector.load %arg1[%c0, %c0_0] : memref<8x8xf32, #tpu.memory_space<vmem>>, vector<8x8xf32>
    %c0_1 = arith.constant 0 : index
    %c0_2 = arith.constant 0 : index
    %1 = vector.load %arg2[%c0_1, %c0_2] : memref<8x128xf32, #tpu.memory_space<vmem>>, vector<8x128xf32>
    %cst = arith.constant dense<0.000000e+00> : vector<8x128xf32>
    %2 = tpu.matmul %0, %1, %cst {dimension_numbers = #tpu.dot_dimension_numbers<[1], [0], [0], [1], [0, 0, 1, 1], [], []>} : vector<8x8xf32>, vector<8x128xf32>, vector<8x128xf32> -> vector<8x128xf32>
    %c0_3 = arith.constant 0 : index
    %c0_4 = arith.constant 0 : index
    %3 = vector.load %arg3[%c0_3, %c0_4] : memref<1x128xf32, #tpu.memory_space<vmem>>, vector<1x128xf32>
    %4 = vector.broadcast %3 : vector<1x128xf32> to vector<8x128xf32>
    %5 = arith.addf %2, %4 : vector<8x128xf32>
    %6 = math.tanh %5 : vector<8x128xf32>
    %c0_5 = arith.constant 0 : index
    %c0_6 = arith.constant 0 : index
    %7 = vector.load %arg4[%c0_5, %c0_6] : memref<128x8xf32, #tpu.memory_space<vmem>>, vector<128x8xf32>
    %cst_7 = arith.constant dense<0.000000e+00> : vector<8x8xf32>
    %8 = tpu.matmul %6, %7, %cst_7 {dimension_numbers = #tpu.dot_dimension_numbers<[1], [0], [0], [1], [0, 0, 1, 1], [], []>} : vector<8x128xf32>, vector<128x8xf32>, vector<8x8xf32> -> vector<8x8xf32>
    %c0_8 = arith.constant 0 : index
    %c0_9 = arith.constant 0 : index
    %9 = vector.load %arg5[%c0_8, %c0_9] : memref<1x8xf32, #tpu.memory_space<vmem>>, vector<1x8xf32>
    %10 = vector.broadcast %9 : vector<1x8xf32> to vector<8x8xf32>
    %11 = arith.addf %8, %10 : vector<8x8xf32>
    %c0_10 = arith.constant 0 : index
    %c0_11 = arith.constant 0 : index
    %12 = vector.load %arg6[%c0_10, %c0_11] : memref<8x8xf32, #tpu.memory_space<vmem>>, vector<8x8xf32>
    tpu.vector_store %arg6[%c0_10, %c0_11], %11 {strides = array<i32>} : memref<8x8xf32, #tpu.memory_space<vmem>>, vector<8x8xf32>,
    return
  }
  func.func @transform_0(%arg0: i32) -> (i32, i32) {
    %c0_i32 = arith.constant 0 : i32
    %c0_i32_0 = arith.constant 0 : i32
    return %arg0, %c0_i32 : i32, i32
  }
  func.func @transform_1(%arg0: i32) -> (i32, i32) {
    %c0_i32 = arith.constant 0 : i32
    %c0_i32_0 = arith.constant 0 : i32
    %c0_i32_1 = arith.constant 0 : i32
    return %c0_i32, %c0_i32_0 : i32, i32
  }
  func.func @transform_2(%arg0: i32) -> (i32, i32) {
    %c0_i32 = arith.constant 0 : i32
    %c0_i32_0 = arith.constant 0 : i32
    %c0_i32_1 = arith.constant 0 : i32
    return %c0_i32, %c0_i32_0 : i32, i32
  }
  func.func @transform_3(%arg0: i32) -> (i32, i32) {
    %c0_i32 = arith.constant 0 : i32
    %c0_i32_0 = arith.constant 0 : i32
    %c0_i32_1 = arith.constant 0 : i32
    return %c0_i32, %c0_i32_0 : i32, i32
  }
  func.func @transform_4(%arg0: i32) -> (i32, i32) {
    %c0_i32 = arith.constant 0 : i32
    %c0_i32_0 = arith.constant 0 : i32
    %c0_i32_1 = arith.constant 0 : i32
    return %c0_i32, %c0_i32_0 : i32, i32
  }
  func.func @transform_5(%arg0: i32) -> (i32, i32) {
    %c0_i32 = arith.constant 0 : i32
    %c0_i32_0 = arith.constant 0 : i32
    return %arg0, %c0_i32 : i32, i32
  }
}

</mosaic_0001>

<llo_original>
// kernel: tpu_custom_call.1
$region0: #{tpu_custom_call.1}
  #allocation0 [shape = 'u32[]', space=smem, size = 0x4, offset = 0x4, fixed_abs, tag = 'smem constant byte address 0x4 - core index']
  #allocation1 [shape = 'u32[144,128]{1,0:T(1,128)}', space=vmem, size = 0x12000, scoped, tag = 'internal scratch']
  %s0 = inlined_call_operand.vmem [shape: f32[8,8], index: 0, kind: input, shape index: {}]
  %s1 = inlined_call_operand.vmem [shape: f32[8,128], index: 1, kind: input, shape index: {}]
  %s2 = inlined_call_operand.vmem [shape: f32[1,128], index: 2, kind: input, shape index: {}]
  %s3 = inlined_call_operand.vmem [shape: f32[128,8], index: 3, kind: input, shape index: {}]
  %s4 = inlined_call_operand.vmem [shape: f32[1,8], index: 4, kind: input, shape index: {}]
  %s5 = inlined_call_operand.hbm [shape: f32[8,8], index: 5, kind: output, shape index: {}]
  %s6 = sld [smem:[#allocation0]]
  $region30: #{tpu_custom_call.1} parent=0
    _
  %s8 = ssub.s32 1, %s6
  %s9 = scalar_select 0, %s8, %s6
  $region1: #{tpu_custom_call.1} parent=0
    #allocation2 [shape = 'u8[4096]{0}', space=vmem, size = 0x1000, scoped, tag = 'output window, operand 0, single buffered']
    #allocation3 [shape = 's32[1]{0}', space=sflag, size = 0x4, scoped, tag = 'scoped memory for tpu_custom_call.1']
    %10 = vsyncpa [#allocation3], 0
    // Predicated region
    $region2: #{tpu_custom_call.1} parent=1 // pred_check
      _
    $region3: #{tpu_custom_call.1} parent=1 // pred_check_branch
      %12 = sbr.rel (0) target = $region5
    $region4: #{tpu_custom_call.1} parent=1 // pred_region
      _
    $region5: #{tpu_custom_call.1} parent=1 // pred_fallthru
      _
    // Predicated region
    $region6: #{tpu_custom_call.1} parent=1 // pred_check
      _
    $region7: #{tpu_custom_call.1} parent=1 // pred_check_branch
      %14 = sbr.rel (0) target = $region9
    $region8: #{tpu_custom_call.1} parent=1 // pred_region
      _
    $region9: #{tpu_custom_call.1} parent=1 // pred_fallthru
      _
    // Predicated region
    $region10: #{tpu_custom_call.1} parent=1 // pred_check
      _
    $region11: #{tpu_custom_call.1} parent=1 // pred_check_branch
      %16 = sbr.rel (0) target = $region13
    $region12: #{tpu_custom_call.1} parent=1 // pred_region
      _
    $region13: #{tpu_custom_call.1} parent=1 // pred_fallthru
      _
    // Predicated region
    $region14: #{tpu_custom_call.1} parent=1 // pred_check
      _
    $region15: #{tpu_custom_call.1} parent=1 // pred_check_branch
      %18 = sbr.rel (0) target = $region17
    $region16: #{tpu_custom_call.1} parent=1 // pred_region
      _
    $region17: #{tpu_custom_call.1} parent=1 // pred_fallthru
      _
    // Predicated region
    $region18: #{tpu_custom_call.1} parent=1 // pred_check
      _
    $region19: #{tpu_custom_call.1} parent=1 // pred_check_branch
      %20 = sbr.rel (0) target = $region21
    $region20: #{tpu_custom_call.1} parent=1 // pred_region
      _
    $region21: #{tpu_custom_call.1} parent=1 // pred_fallthru
      _
    %v21 = vld [vmem:[%s0] sm:$0xff]
    %v22 = vld [vmem:[%s1] sm:$0xff]
    %v23 = vld [vmem:[%s2] sm:$0x1]
    %v25 = vlaneseq
    %v26 = vshrl.u32 %v25, 7
    %v27 = vsub.s32 0, %v26
    %v28 = vrot.slane %v23, %v27
    %vm30 = vcmask 64512
    %v32 = vsel %vm30, %v21, 0
    %34 = vmatprep.subr.mxu0 0.0
    %35 = vmatpush1.msra.mxu0 %v22
    %36 = vmatprep.subr.mxu0 0.0
    %37 = vmatpush1.msra.mxu0 0.0
    %38 = vmatprep.subr.mxu0 0.0
    %39 = vmatpush1.msra.mxu0 0.0
    %40 = vmatprep.subr.mxu0 0.0
    %41 = vmatpush1.msra.mxu0 0.0
    %42 = vmatprep.subr.mxu0 0.0
    %43 = vmatpush1.msra.mxu0 0.0
    %44 = vmatprep.subr.mxu0 0.0
    %45 = vmatpush1.msra.mxu0 0.0
    %46 = vmatprep.subr.mxu0 0.0
    %47 = vmatpush1.msra.mxu0 0.0
    %48 = vmatprep.subr.mxu0 0.0
    %49 = vmatpush1.msra.mxu0 0.0
    %50 = vmatprep.subr.mxu0 0.0
    %51 = vmatpush1.msra.mxu0 0.0
    %52 = vmatprep.subr.mxu0 0.0
    %53 = vmatpush1.msra.mxu0 0.0
    %54 = vmatprep.subr.mxu0 0.0
    %55 = vmatpush1.msra.mxu0 0.0
    %56 = vmatprep.subr.mxu0 0.0
    %57 = vmatpush1.msra.mxu0 0.0
    %58 = vmatprep.subr.mxu0 0.0
    %59 = vmatpush1.msra.mxu0 0.0
    %60 = vmatprep.subr.mxu0 0.0
    %61 = vmatpush1.msra.mxu0 0.0
    %62 = vmatprep.subr.mxu0 0.0
    %63 = vmatpush1.msra.mxu0 0.0
    %64 = vmatprep.subr.mxu0 0.0
    %65 = vmatpush1.msra.mxu0 0.0
    %66 = vmatprep.subr.mxu0 0.0
    %67 = vmatpush1.msra.mxu0 0.0
    %68 = vmatprep.subr.mxu0 0.0
    %69 = vmatpush1.msra.mxu0 0.0
    %70 = vmatprep.subr.mxu0 0.0
    %71 = vmatpush1.msra.mxu0 0.0
    %72 = vmatprep.subr.mxu0 0.0
    %73 = vmatpush1.msra.mxu0 0.0
    %74 = vmatprep.subr.mxu0 0.0
    %75 = vmatpush1.msra.mxu0 0.0
    %76 = vmatprep.subr.mxu0 0.0
    %77 = vmatpush1.msra.mxu0 0.0
    %78 = vmatprep.subr.mxu0 0.0
    %79 = vmatpush1.msra.mxu0 0.0
    %80 = vmatprep.subr.mxu0 0.0
    %81 = vmatpush1.msra.mxu0 0.0
    %82 = vmatprep.subr.mxu0 0.0
    %83 = vmatpush1.msra.mxu0 0.0
    %84 = vmatprep.subr.mxu0 0.0
    %85 = vmatpush1.msra.mxu0 0.0
    %86 = vmatprep.subr.mxu0 0.0
    %87 = vmatpush1.msra.mxu0 0.0
    %88 = vmatprep.subr.mxu0 0.0
    %89 = vmatpush1.msra.mxu0 0.0
    %90 = vmatprep.subr.mxu0 0.0
    %91 = vmatpush1.msra.mxu0 0.0
    %92 = vmatprep.subr.mxu0 0.0
    %93 = vmatpush1.msra.mxu0 0.0
    %94 = vmatprep.subr.mxu0 0.0
    %95 = vmatpush1.msra.mxu0 0.0
    %96 = vmatprep.subr.mxu0 0.0
    %97 = vmatpush1.msra.mxu0 0.0
    %98 = vmatprep.mubr.f32.mxu0 0.0
    %99 = vmatmul.mubr.f32.gmra.mrb[0].mxu0 %v32
    %v100 = vpop.f32.mrb[0].mxu0
    %v101 = vadd.f32 %v28, %v100
    %v102 = vpop.f32.mrb[0].mxu0
    %103 = vdwg.mxu0
    %v104 = vtanh.pop %v101
    %v105 = vld [vmem:[%s3] sm:$0xff]
    %v106 = vld [vmem:[%s3 + $0x8] sm:$0xff]
    %v107 = vld [vmem:[%s3 + $0x10] sm:$0xff]
    %v108 = vld [vmem:[%s3 + $0x18] sm:$0xff]
    %v109 = vld [vmem:[%s3 + $0x20] sm:$0xff]
    %v110 = vld [vmem:[%s3 + $0x28] sm:$0xff]
    %v111 = vld [vmem:[%s3 + $0x30] sm:$0xff]
    %v112 = vld [vmem:[%s3 + $0x38] sm:$0xff]
    %v113 = vld [vmem:[%s3 + $0x40] sm:$0xff]
    %v114 = vld [vmem:[%s3 + $0x48] sm:$0xff]
    %v115 = vld [vmem:[%s3 + $0x50] sm:$0xff]
    %v116 = vld [vmem:[%s3 + $0x58] sm:$0xff]
    %v117 = vld [vmem:[%s3 + $0x60] sm:$0xff]
    %v118 = vld [vmem:[%s3 + $0x68] sm:$0xff]
    %v119 = vld [vmem:[%s3 + $0x70] sm:$0xff]
    %v120 = vld [vmem:[%s3 + $0x78] sm:$0xff]
    %v121 = vld [vmem:[%s4] sm:$0x1]
    %v123 = vlaneseq
    %v124 = vshrl.u32 %v123, 7
    %v125 = vsub.s32 0, %v124
    %v126 = vrot.slane %v121, %v125
    %128 = vmatprep.subr.mxu0 0.0
    %129 = vmatpush1.msra.mxu0 %v105
    %130 = vmatprep.subr.mxu0 0.0
    %131 = vmatpush1.msra.mxu0 %v106
    %132 = vmatprep.subr.mxu0 0.0
    %133 = vmatpush1.msra.mxu0 %v107
    %134 = vmatprep.subr.mxu0 0.0
    %135 = vmatpush1.msra.mxu0 %v108
    %136 = vmatprep.subr.mxu0 0.0
    %137 = vmatpush1.msra.mxu0 %v109
    %138 = vmatprep.subr.mxu0 0.0
    %139 = vmatpush1.msra.mxu0 %v110
    %140 = vmatprep.subr.mxu0 0.0
    %141 = vmatpush1.msra.mxu0 %v111
    %142 = vmatprep.subr.mxu0 0.0
    %143 = vmatpush1.msra.mxu0 %v112
    %144 = vmatprep.subr.mxu0 0.0
    %145 = vmatpush1.msra.mxu0 %v113
    %146 = vmatprep.subr.mxu0 0.0
    %147 = vmatpush1.msra.mxu0 %v114
    %148 = vmatprep.subr.mxu0 0.0
    %149 = vmatpush1.msra.mxu0 %v115
    %150 = vmatprep.subr.mxu0 0.0
    %151 = vmatpush1.msra.mxu0 %v116
    %152 = vmatprep.subr.mxu0 0.0
    %153 = vmatpush1.msra.mxu0 %v117
    %154 = vmatprep.subr.mxu0 0.0
    %155 = vmatpush1.msra.mxu0 %v118
    %156 = vmatprep.subr.mxu0 0.0
    %157 = vmatpush1.msra.mxu0 %v119
    %158 = vmatprep.subr.mxu0 0.0
    %159 = vmatpush1.msra.mxu0 %v120
    %160 = vmatprep.subr.mxu0 0.0
    %161 = vmatpush1.msra.mxu0 0.0
    %162 = vmatprep.subr.mxu0 0.0
    %163 = vmatpush1.msra.mxu0 0.0
    %164 = vmatprep.subr.mxu0 0.0
    %165 = vmatpush1.msra.mxu0 0.0
    %166 = vmatprep.subr.mxu0 0.0
    %167 = vmatpush1.msra.mxu0 0.0
    %168 = vmatprep.subr.mxu0 0.0
    %169 = vmatpush1.msra.mxu0 0.0
    %170 = vmatprep.subr.mxu0 0.0
    %171 = vmatpush1.msra.mxu0 0.0
    %172 = vmatprep.subr.mxu0 0.0
    %173 = vmatpush1.msra.mxu0 0.0
    %174 = vmatprep.subr.mxu0 0.0
    %175 = vmatpush1.msra.mxu0 0.0
    %176 = vmatprep.subr.mxu0 0.0
    %177 = vmatpush1.msra.mxu0 0.0
    %178 = vmatprep.subr.mxu0 0.0
    %179 = vmatpush1.msra.mxu0 0.0
    %180 = vmatprep.subr.mxu0 0.0
    %181 = vmatpush1.msra.mxu0 0.0
    %182 = vmatprep.subr.mxu0 0.0
    %183 = vmatpush1.msra.mxu0 0.0
    %184 = vmatprep.subr.mxu0 0.0
    %185 = vmatpush1.msra.mxu0 0.0
    %186 = vmatprep.subr.mxu0 0.0
    %187 = vmatpush1.msra.mxu0 0.0
    %188 = vmatprep.subr.mxu0 0.0
    %189 = vmatpush1.msra.mxu0 0.0
    %190 = vmatprep.subr.mxu0 0.0
    %191 = vmatpush1.msra.mxu0 0.0
    %192 = vmatprep.mubr.f32.mxu0 0.0
    %193 = vmatmul.mubr.f32.gmra.mrb[0].mxu0 %v104
    %v194 = vpop.f32.mrb[0].mxu0
    %v195 = vadd.f32 %v126, %v194
    %v196 = vpop.f32.mrb[0].mxu0
    %197 = vdwg.mxu0
    %198 = vst.msk [vmem:[#allocation2] sm:$0xff] %vm30, %v195
    // Predicated region
    $region22: #{tpu_custom_call.1} parent=1 // pred_check
      _
    $region23: #{tpu_custom_call.1} parent=1 // pred_check_branch
      %200 = sbr.rel (0) target = $region25
    $region24: #{tpu_custom_call.1} parent=1 // pred_region
      %s202 = ssub.s32 128, 128
      %203 = vsyncadd [#allocation3], %s202
      %s205 = sshll.u32 [#allocation2], 4
      %s206 = int_to_ptr.vmem [resolvable:$true] %s205
      %208 = dma.vmem_to_hbm [thread:$0]  %s206, 128, %s5, [#allocation3]
    $region25: #{tpu_custom_call.1} parent=1 // pred_fallthru
      _
    // Predicated region
    $region26: #{tpu_custom_call.1} parent=1 // pred_check
      _
    $region27: #{tpu_custom_call.1} parent=1 // pred_check_branch
      %210 = sbr.rel (0) target = $region29
    $region28: #{tpu_custom_call.1} parent=1 // pred_region
      %211 = dma.done [#allocation3], 128
    $region29: #{tpu_custom_call.1} parent=1 // pred_fallthru
      _
    %212 = vsyncpa [#allocation3], 1

</llo_original>
